<compile_context>
chip_gen: v7x
topology: tpu7x:2x2x1
jax: 0.10.0
libtpu: 0.0.40
codegen_flags: <defaults>
</compile_context>

<pallas_src>
import math
import jax
import jax.numpy as jnp
from jax.experimental import pallas as pl
from jax.experimental.pallas import tpu as pltpu


def _sero_q_kernel(s_ref, a_ref, w1s_ref, w1a_ref, b1_ref,
                   w2_ref, b2_ref, w3_ref, b3_ref, q_ref):
    # Layer 1 (fused twin critics), concat folded into two matmuls on the raw inputs.
    h = jnp.dot(s_ref[...], w1s_ref[...], preferred_element_type=jnp.float32)
    h = h + jnp.dot(a_ref[...], w1a_ref[...], preferred_element_type=jnp.float32)
    h = jnp.maximum(h + b1_ref[...], 0.0)                              # (TB, 2H)
    # Layer 2 (block-diagonal packed).
    h = jnp.dot(h, w2_ref[...], preferred_element_type=jnp.float32) + b2_ref[...]
    h = jnp.maximum(h, 0.0)                                            # (TB, 2H)
    # Layer 3 (block-diagonal packed) -> (TB, 2) = [q1 | q2].
    q_ref[...] = (
        jnp.dot(h, w3_ref[...], preferred_element_type=jnp.float32) + b3_ref[...]
    )


def _round_up(x, m):
    return ((x + m - 1) // m) * m


def pack_twin_critic_params(q1_params, q2_params, num_inputs):
    """Pack two 3-layer MLP critics into fused weights for one kernel.

    Each critic param tuple is (w1, b1, w2, b2, w3, b3) with weights stored
    transposed vs nn.Linear, i.e. w: (in, out), b: (1, out).  The layer-1
    weight is additionally split row-wise into its state / action parts so the
    kernel can consume state and action without a wrapper-side concat.
    """
    w1a, b1a, w2a, b2a, w3a, b3a = q1_params
    w1b, b1b, w2b, b2b, w3b, b3b = q2_params
    H = w1a.shape[1]
    zHH = jnp.zeros((H, H), jnp.float32)
    zH1 = jnp.zeros((H, 1), jnp.float32)

    w1f = jnp.concatenate([w1a, w1b], axis=1)                           # (Din, 2H)
    w1s = w1f[:num_inputs, :]                                           # (Nin, 2H)
    w1a_ = w1f[num_inputs:, :]                                          # (Na,  2H)
    b1f = jnp.concatenate([b1a, b1b], axis=1)                           # (1, 2H)

    w2f = jnp.concatenate(                                              # (2H, 2H) block-diag
        [jnp.concatenate([w2a, zHH], axis=1),
         jnp.concatenate([zHH, w2b], axis=1)], axis=0)
    b2f = jnp.concatenate([b2a, b2b], axis=1)                           # (1, 2H)

    w3f = jnp.concatenate(                                              # (2H, 2) block-diag
        [jnp.concatenate([w3a, zH1], axis=1),
         jnp.concatenate([zH1, w3b], axis=1)], axis=0)
    b3f = jnp.concatenate([b3a, b3b], axis=1)                           # (1, 2)

    return dict(w1s=w1s, w1a=w1a_, b1=b1f, w2=w2f, b2=b2f, w3=w3f, b3=b3f)


def sero_qnetwork_forward(state, action, packed, *, batch_tile=512):
    """Forward of SeRO_QNetwork ('vector'): returns (q1, q2), each (B, 1)."""
    state = state.astype(jnp.float32)
    action = action.astype(jnp.float32)
    B, ns = state.shape
    na = action.shape[1]
    h2 = packed["w1s"].shape[1]                        # 2 * hidden_dim

    tb = min(batch_tile, _round_up(B, 8))              # rows per grid step (multiple of 8)
    bp = _round_up(B, tb)
    if bp != B:
        state = jnp.pad(state, ((0, bp - B), (0, 0)))
        action = jnp.pad(action, ((0, bp - B), (0, 0)))

    q = pl.pallas_call(
        _sero_q_kernel,
        out_shape=jax.ShapeDtypeStruct((bp, 2), jnp.float32),
        grid_spec=pltpu.PrefetchScalarGridSpec(
            num_scalar_prefetch=0,
            grid=(bp // tb,),
            in_specs=[
                pl.BlockSpec((tb, ns), lambda i: (i, 0)),      # streamed state tile
                pl.BlockSpec((tb, na), lambda i: (i, 0)),      # streamed action tile
                pl.BlockSpec((ns, h2), lambda i: (0, 0)),      # resident packed weights
                pl.BlockSpec((na, h2), lambda i: (0, 0)),
                pl.BlockSpec((1, h2), lambda i: (0, 0)),
                pl.BlockSpec((h2, h2), lambda i: (0, 0)),
                pl.BlockSpec((1, h2), lambda i: (0, 0)),
                pl.BlockSpec((h2, 2), lambda i: (0, 0)),
                pl.BlockSpec((1, 2), lambda i: (0, 0)),
            ],
            out_specs=pl.BlockSpec((tb, 2), lambda i: (i, 0)),
        ),
        compiler_params=pltpu.CompilerParams(
            dimension_semantics=("parallel",),         # megacore sharding on v7x
            vmem_limit_bytes=32 * 1024 * 1024,
        ),
    )(state, action, packed["w1s"], packed["w1a"], packed["b1"],
      packed["w2"], packed["b2"], packed["w3"], packed["b3"])

    q = q[:B]
    return q[:, 0:1], q[:, 1:2]


def _init_linear(key, fan_in, fan_out):
    # Mimic nn.Linear default init: U(-1/sqrt(fan_in), 1/sqrt(fan_in)).
    kw, kb = jax.random.split(key)
    bound = 1.0 / math.sqrt(fan_in)
    w = jax.random.uniform(kw, (fan_in, fan_out), jnp.float32, -bound, bound)
    b = jax.random.uniform(kb, (1, fan_out), jnp.float32, -bound, bound)
    return w, b


def _init_critic(key, din, hidden):
    k1, k2, k3 = jax.random.split(key, 3)
    w1, b1 = _init_linear(k1, din, hidden)
    w2, b2 = _init_linear(k2, hidden, hidden)
    w3, b3 = _init_linear(k3, hidden, 1)
    return (w1, b1, w2, b2, w3, b3)


def _reference(state, action, q1p, q2p):
    sa = jnp.concatenate([state, action], axis=-1)

    def mlp(x, p):
        w1, b1, w2, b2, w3, b3 = p
        h = jnp.maximum(x @ w1 + b1, 0.0)
        h = jnp.maximum(h @ w2 + b2, 0.0)
        return h @ w3 + b3

    return mlp(sa, q1p), mlp(sa, q2p)


if __name__ == "__main__":
    # Small shapes consistent with observation_type='vector'
    B, NUM_INPUTS, NUM_ACTIONS, HIDDEN = 2, 16, 4, 32
    DIN = NUM_INPUTS + NUM_ACTIONS

    root = jax.random.PRNGKey(0)
    k_state, k_action, k_q1, k_q2 = jax.random.split(root, 4)

    state = jax.random.normal(k_state, (B, NUM_INPUTS), jnp.float32)
    action = jax.random.normal(k_action, (B, NUM_ACTIONS), jnp.float32)

    q1_params = _init_critic(k_q1, DIN, HIDDEN)
    q2_params = _init_critic(k_q2, DIN, HIDDEN)
    packed = pack_twin_critic_params(q1_params, q2_params, NUM_INPUTS)

    q1, q2 = jax.block_until_ready(sero_qnetwork_forward(state, action, packed))

    r1, r2 = _reference(state, action, q1_params, q2_params)
    assert q1.shape == (B, 1) and q2.shape == (B, 1)
    assert q1.dtype == jnp.float32 and q2.dtype == jnp.float32
    assert jnp.allclose(q1, r1, atol=1e-4, rtol=1e-4), "q1 mismatch vs reference"
    assert jnp.allclose(q2, r2, atol=1e-4, rtol=1e-4), "q2 mismatch vs reference"

    print("KERNEL_OK")
</pallas_src>

<mosaic_0001>
module attributes {stable_mosaic.version = 11 : i64} {
  func.func @_sero_q_kernel(%arg0: i32, %arg1: memref<8x16xf32, #tpu.memory_space<vmem>>, %arg2: memref<8x4xf32, #tpu.memory_space<vmem>>, %arg3: memref<16x64xf32, #tpu.memory_space<vmem>>, %arg4: memref<4x64xf32, #tpu.memory_space<vmem>>, %arg5: memref<1x64xf32, #tpu.memory_space<vmem>>, %arg6: memref<64x64xf32, #tpu.memory_space<vmem>>, %arg7: memref<1x64xf32, #tpu.memory_space<vmem>>, %arg8: memref<64x2xf32, #tpu.memory_space<vmem>>, %arg9: memref<1x2xf32, #tpu.memory_space<vmem>>, %arg10: memref<8x2xf32, #tpu.memory_space<vmem>>) attributes {dimension_semantics = [#tpu.dimension_semantics<parallel>], iteration_bounds = array<i64: 1>, scalar_prefetch = 0 : i64, scratch_operands = 0 : i64, tpu.core_type = #tpu.core_type<tc>, window_params = [{transform_indices = @transform_0, window_bounds = array<i64: 8, 16>}, {transform_indices = @transform_1, window_bounds = array<i64: 8, 4>}, {pipeline_mode = #tpu.pipeline_mode<synchronous>, transform_indices = @transform_2, window_bounds = array<i64: 16, 64>}, {pipeline_mode = #tpu.pipeline_mode<synchronous>, transform_indices = @transform_3, window_bounds = array<i64: 4, 64>}, {pipeline_mode = #tpu.pipeline_mode<synchronous>, transform_indices = @transform_4, window_bounds = array<i64: 1, 64>}, {pipeline_mode = #tpu.pipeline_mode<synchronous>, transform_indices = @transform_5, window_bounds = array<i64: 64, 64>}, {pipeline_mode = #tpu.pipeline_mode<synchronous>, transform_indices = @transform_6, window_bounds = array<i64: 1, 64>}, {pipeline_mode = #tpu.pipeline_mode<synchronous>, transform_indices = @transform_7, window_bounds = array<i64: 64, 2>}, {pipeline_mode = #tpu.pipeline_mode<synchronous>, transform_indices = @transform_8, window_bounds = array<i64: 1, 2>}, {transform_indices = @transform_9, window_bounds = array<i64: 8, 2>}]} {
    %c0 = arith.constant 0 : index
    %c0_0 = arith.constant 0 : index
    %0 = vector.load %arg1[%c0, %c0_0] : memref<8x16xf32, #tpu.memory_space<vmem>>, vector<8x16xf32>
    %c0_1 = arith.constant 0 : index
    %c0_2 = arith.constant 0 : index
    %1 = vector.load %arg3[%c0_1, %c0_2] : memref<16x64xf32, #tpu.memory_space<vmem>>, vector<16x64xf32>
    %cst = arith.constant dense<0.000000e+00> : vector<8x64xf32>
    %2 = tpu.matmul %0, %1, %cst {dimension_numbers = #tpu.dot_dimension_numbers<[1], [0], [0], [1], [0, 0, 1, 1], [], []>} : vector<8x16xf32>, vector<16x64xf32>, vector<8x64xf32> -> vector<8x64xf32>
    %c0_3 = arith.constant 0 : index
    %c0_4 = arith.constant 0 : index
    %3 = vector.load %arg2[%c0_3, %c0_4] : memref<8x4xf32, #tpu.memory_space<vmem>>, vector<8x4xf32>
    %c0_5 = arith.constant 0 : index
    %c0_6 = arith.constant 0 : index
    %4 = vector.load %arg4[%c0_5, %c0_6] : memref<4x64xf32, #tpu.memory_space<vmem>>, vector<4x64xf32>
    %cst_7 = arith.constant dense<0.000000e+00> : vector<8x64xf32>
    %5 = tpu.matmul %3, %4, %cst_7 {dimension_numbers = #tpu.dot_dimension_numbers<[1], [0], [0], [1], [0, 0, 1, 1], [], []>} : vector<8x4xf32>, vector<4x64xf32>, vector<8x64xf32> -> vector<8x64xf32>
    %6 = arith.addf %2, %5 : vector<8x64xf32>
    %c0_8 = arith.constant 0 : index
    %c0_9 = arith.constant 0 : index
    %7 = vector.load %arg5[%c0_8, %c0_9] : memref<1x64xf32, #tpu.memory_space<vmem>>, vector<1x64xf32>
    %8 = vector.broadcast %7 : vector<1x64xf32> to vector<8x64xf32>
    %9 = arith.addf %6, %8 : vector<8x64xf32>
    %cst_10 = arith.constant 0.000000e+00 : f32
    %10 = vector.broadcast %cst_10 : f32 to vector<8x64xf32>
    %11 = arith.maximumf %9, %10 : vector<8x64xf32>
    %c0_11 = arith.constant 0 : index
    %c0_12 = arith.constant 0 : index
    %12 = vector.load %arg6[%c0_11, %c0_12] : memref<64x64xf32, #tpu.memory_space<vmem>>, vector<64x64xf32>
    %cst_13 = arith.constant dense<0.000000e+00> : vector<8x64xf32>
    %13 = tpu.matmul %11, %12, %cst_13 {dimension_numbers = #tpu.dot_dimension_numbers<[1], [0], [0], [1], [0, 0, 1, 1], [], []>} : vector<8x64xf32>, vector<64x64xf32>, vector<8x64xf32> -> vector<8x64xf32>
    %c0_14 = arith.constant 0 : index
    %c0_15 = arith.constant 0 : index
    %14 = vector.load %arg7[%c0_14, %c0_15] : memref<1x64xf32, #tpu.memory_space<vmem>>, vector<1x64xf32>
    %15 = vector.broadcast %14 : vector<1x64xf32> to vector<8x64xf32>
    %16 = arith.addf %13, %15 : vector<8x64xf32>
    %cst_16 = arith.constant 0.000000e+00 : f32
    %17 = vector.broadcast %cst_16 : f32 to vector<8x64xf32>
    %18 = arith.maximumf %16, %17 : vector<8x64xf32>
    %c0_17 = arith.constant 0 : index
    %c0_18 = arith.constant 0 : index
    %19 = vector.load %arg8[%c0_17, %c0_18] : memref<64x2xf32, #tpu.memory_space<vmem>>, vector<64x2xf32>
    %cst_19 = arith.constant dense<0.000000e+00> : vector<8x2xf32>
    %20 = tpu.matmul %18, %19, %cst_19 {dimension_numbers = #tpu.dot_dimension_numbers<[1], [0], [0], [1], [0, 0, 1, 1], [], []>} : vector<8x64xf32>, vector<64x2xf32>, vector<8x2xf32> -> vector<8x2xf32>
    %c0_20 = arith.constant 0 : index
    %c0_21 = arith.constant 0 : index
    %21 = vector.load %arg9[%c0_20, %c0_21] : memref<1x2xf32, #tpu.memory_space<vmem>>, vector<1x2xf32>
    %22 = vector.broadcast %21 : vector<1x2xf32> to vector<8x2xf32>
    %23 = arith.addf %20, %22 : vector<8x2xf32>
    %c0_22 = arith.constant 0 : index
    %c0_23 = arith.constant 0 : index
    %24 = vector.load %arg10[%c0_22, %c0_23] : memref<8x2xf32, #tpu.memory_space<vmem>>, vector<8x2xf32>
    tpu.vector_store %arg10[%c0_22, %c0_23], %23 {strides = array<i32>} : memref<8x2xf32, #tpu.memory_space<vmem>>, vector<8x2xf32>,
    return
  }
  func.func @transform_0(%arg0: i32) -> (i32, i32) {
    %c0_i32 = arith.constant 0 : i32
    %c0_i32_0 = arith.constant 0 : i32
    return %arg0, %c0_i32 : i32, i32
  }
  func.func @transform_1(%arg0: i32) -> (i32, i32) {
    %c0_i32 = arith.constant 0 : i32
    %c0_i32_0 = arith.constant 0 : i32
    return %arg0, %c0_i32 : i32, i32
  }
  func.func @transform_2(%arg0: i32) -> (i32, i32) {
    %c0_i32 = arith.constant 0 : i32
    %c0_i32_0 = arith.constant 0 : i32
    %c0_i32_1 = arith.constant 0 : i32
    return %c0_i32, %c0_i32_0 : i32, i32
  }
  func.func @transform_3(%arg0: i32) -> (i32, i32) {
    %c0_i32 = arith.constant 0 : i32
    %c0_i32_0 = arith.constant 0 : i32
    %c0_i32_1 = arith.constant 0 : i32
    return %c0_i32, %c0_i32_0 : i32, i32
  }
  func.func @transform_4(%arg0: i32) -> (i32, i32) {
    %c0_i32 = arith.constant 0 : i32
    %c0_i32_0 = arith.constant 0 : i32
    %c0_i32_1 = arith.constant 0 : i32
    return %c0_i32, %c0_i32_0 : i32, i32
  }
  func.func @transform_5(%arg0: i32) -> (i32, i32) {
    %c0_i32 = arith.constant 0 : i32
    %c0_i32_0 = arith.constant 0 : i32
    %c0_i32_1 = arith.constant 0 : i32
    return %c0_i32, %c0_i32_0 : i32, i32
  }
  func.func @transform_6(%arg0: i32) -> (i32, i32) {
    %c0_i32 = arith.constant 0 : i32
    %c0_i32_0 = arith.constant 0 : i32
    %c0_i32_1 = arith.constant 0 : i32
    return %c0_i32, %c0_i32_0 : i32, i32
  }
  func.func @transform_7(%arg0: i32) -> (i32, i32) {
    %c0_i32 = arith.constant 0 : i32
    %c0_i32_0 = arith.constant 0 : i32
    %c0_i32_1 = arith.constant 0 : i32
    return %c0_i32, %c0_i32_0 : i32, i32
  }
  func.func @transform_8(%arg0: i32) -> (i32, i32) {
    %c0_i32 = arith.constant 0 : i32
    %c0_i32_0 = arith.constant 0 : i32
    %c0_i32_1 = arith.constant 0 : i32
    return %c0_i32, %c0_i32_0 : i32, i32
  }
  func.func @transform_9(%arg0: i32) -> (i32, i32) {
    %c0_i32 = arith.constant 0 : i32
    %c0_i32_0 = arith.constant 0 : i32
    return %arg0, %c0_i32 : i32, i32
  }
}

</mosaic_0001>

<llo_original>
// kernel: tpu_custom_call.1
$region0: #{tpu_custom_call.1}
  #allocation0 [shape = 'u32[]', space=smem, size = 0x4, offset = 0x4, fixed_abs, tag = 'smem constant byte address 0x4 - core index']
  #allocation1 [shape = 'u32[144,128]{1,0:T(1,128)}', space=vmem, size = 0x12000, scoped, tag = 'internal scratch']
  %s0 = inlined_call_operand.vmem [shape: f32[8,16], index: 0, kind: input, shape index: {}]
  %s1 = inlined_call_operand.vmem [shape: f32[8,4], index: 1, kind: input, shape index: {}]
  %s2 = inlined_call_operand.vmem [shape: f32[16,64], index: 2, kind: input, shape index: {}]
  %s3 = inlined_call_operand.vmem [shape: f32[4,64], index: 3, kind: input, shape index: {}]
  %s4 = inlined_call_operand.vmem [shape: f32[1,64], index: 4, kind: input, shape index: {}]
  %s5 = inlined_call_operand.vmem [shape: f32[64,64], index: 5, kind: input, shape index: {}]
  %s6 = inlined_call_operand.vmem [shape: f32[1,64], index: 6, kind: input, shape index: {}]
  %s7 = inlined_call_operand.vmem [shape: f32[64,2], index: 7, kind: input, shape index: {}]
  %s8 = inlined_call_operand.vmem [shape: f32[1,2], index: 8, kind: input, shape index: {}]
  %s9 = inlined_call_operand.vmem [shape: f32[8,2], index: 9, kind: output, shape index: {}]
  %s10 = sld [smem:[#allocation0]]
  $region46: #{tpu_custom_call.1} parent=0
    _
  %s12 = ssub.s32 1, %s10
  %s13 = scalar_select 0, %s12, %s10
  // Predicated region
  $region2: #{tpu_custom_call.1} parent=0 // pred_check
    _
  $region3: #{tpu_custom_call.1} parent=0 // pred_check_branch
    %15 = sbr.rel (0) target = $region5
  $region4: #{tpu_custom_call.1} parent=0 // pred_region
    _
  $region5: #{tpu_custom_call.1} parent=0 // pred_fallthru
    _
  // Predicated region
  $region6: #{tpu_custom_call.1} parent=0 // pred_check
    _
  $region7: #{tpu_custom_call.1} parent=0 // pred_check_branch
    %17 = sbr.rel (0) target = $region9
  $region8: #{tpu_custom_call.1} parent=0 // pred_region
    _
  $region9: #{tpu_custom_call.1} parent=0 // pred_fallthru
    _
  // Predicated region
  $region10: #{tpu_custom_call.1} parent=0 // pred_check
    _
  $region11: #{tpu_custom_call.1} parent=0 // pred_check_branch
    %19 = sbr.rel (0) target = $region13
  $region12: #{tpu_custom_call.1} parent=0 // pred_region
    _
  $region13: #{tpu_custom_call.1} parent=0 // pred_fallthru
    _
  // Predicated region
  $region14: #{tpu_custom_call.1} parent=0 // pred_check
    _
  $region15: #{tpu_custom_call.1} parent=0 // pred_check_branch
    %21 = sbr.rel (0) target = $region17
  $region16: #{tpu_custom_call.1} parent=0 // pred_region
    _
  $region17: #{tpu_custom_call.1} parent=0 // pred_fallthru
    _
  // Predicated region
  $region18: #{tpu_custom_call.1} parent=0 // pred_check
    _
  $region19: #{tpu_custom_call.1} parent=0 // pred_check_branch
    %23 = sbr.rel (0) target = $region21
  $region20: #{tpu_custom_call.1} parent=0 // pred_region
    _
  $region21: #{tpu_custom_call.1} parent=0 // pred_fallthru
    _
  // Predicated region
  $region22: #{tpu_custom_call.1} parent=0 // pred_check
    _
  $region23: #{tpu_custom_call.1} parent=0 // pred_check_branch
    %25 = sbr.rel (0) target = $region25
  $region24: #{tpu_custom_call.1} parent=0 // pred_region
    _
  $region25: #{tpu_custom_call.1} parent=0 // pred_fallthru
    _
  // Predicated region
  $region26: #{tpu_custom_call.1} parent=0 // pred_check
    _
  $region27: #{tpu_custom_call.1} parent=0 // pred_check_branch
    %27 = sbr.rel (0) target = $region29
  $region28: #{tpu_custom_call.1} parent=0 // pred_region
    _
  $region29: #{tpu_custom_call.1} parent=0 // pred_fallthru
    _
  // Predicated region
  $region30: #{tpu_custom_call.1} parent=0 // pred_check
    _
  $region31: #{tpu_custom_call.1} parent=0 // pred_check_branch
    %29 = sbr.rel (0) target = $region33
  $region32: #{tpu_custom_call.1} parent=0 // pred_region
    _
  $region33: #{tpu_custom_call.1} parent=0 // pred_fallthru
    _
  // Predicated region
  $region34: #{tpu_custom_call.1} parent=0 // pred_check
    _
  $region35: #{tpu_custom_call.1} parent=0 // pred_check_branch
    %31 = sbr.rel (0) target = $region37
  $region36: #{tpu_custom_call.1} parent=0 // pred_region
    _
  $region37: #{tpu_custom_call.1} parent=0 // pred_fallthru
    _
  %v32 = vld [vmem:[%s0] sm:$0xff]
  %v33 = vld [vmem:[%s2] sm:$0xff]
  %v34 = vld [vmem:[%s2 + $0x8] sm:$0xff]
  %v35 = vld [vmem:[%s1] sm:$0xff]
  %v36 = vld [vmem:[%s3] sm:$0xf]
  %vm37 = vcmask 31744
  %v39 = vsel %vm37, %v35, 0
  %vm41 = vcmask 1043456
  %v43 = vsel %vm41, %v36, 0
  %45 = vmatprep.subr.mxu0 0.0
  %46 = vmatpush1.msra.mxu0 %v43
  %47 = vmatprep.subr.mxu0 0.0
  %48 = vmatpush1.msra.mxu0 0.0
  %49 = vmatprep.subr.mxu0 0.0
  %50 = vmatpush1.msra.mxu0 0.0
  %51 = vmatprep.subr.mxu0 0.0
  %52 = vmatpush1.msra.mxu0 0.0
  %53 = vmatprep.subr.mxu0 0.0
  %54 = vmatpush1.msra.mxu0 0.0
  %55 = vmatprep.subr.mxu0 0.0
  %56 = vmatpush1.msra.mxu0 0.0
  %57 = vmatprep.subr.mxu0 0.0
  %58 = vmatpush1.msra.mxu0 0.0
  %59 = vmatprep.subr.mxu0 0.0
  %60 = vmatpush1.msra.mxu0 0.0
  %61 = vmatprep.subr.mxu0 0.0
  %62 = vmatpush1.msra.mxu0 0.0
  %63 = vmatprep.subr.mxu0 0.0
  %64 = vmatpush1.msra.mxu0 0.0
  %65 = vmatprep.subr.mxu0 0.0
  %66 = vmatpush1.msra.mxu0 0.0
  %67 = vmatprep.subr.mxu0 0.0
  %68 = vmatpush1.msra.mxu0 0.0
  %69 = vmatprep.subr.mxu0 0.0
  %70 = vmatpush1.msra.mxu0 0.0
  %71 = vmatprep.subr.mxu0 0.0
  %72 = vmatpush1.msra.mxu0 0.0
  %73 = vmatprep.subr.mxu0 0.0
  %74 = vmatpush1.msra.mxu0 0.0
  %75 = vmatprep.subr.mxu0 0.0
  %76 = vmatpush1.msra.mxu0 0.0
  %77 = vmatprep.subr.mxu0 0.0
  %78 = vmatpush1.msra.mxu0 0.0
  %79 = vmatprep.subr.mxu0 0.0
  %80 = vmatpush1.msra.mxu0 0.0
  %81 = vmatprep.subr.mxu0 0.0
  %82 = vmatpush1.msra.mxu0 0.0
  %83 = vmatprep.subr.mxu0 0.0
  %84 = vmatpush1.msra.mxu0 0.0
  %85 = vmatprep.subr.mxu0 0.0
  %86 = vmatpush1.msra.mxu0 0.0
  %87 = vmatprep.subr.mxu0 0.0
  %88 = vmatpush1.msra.mxu0 0.0
  %89 = vmatprep.subr.mxu0 0.0
  %90 = vmatpush1.msra.mxu0 0.0
  %91 = vmatprep.subr.mxu0 0.0
  %92 = vmatpush1.msra.mxu0 0.0
  %93 = vmatprep.subr.mxu0 0.0
  %94 = vmatpush1.msra.mxu0 0.0
  %95 = vmatprep.subr.mxu0 0.0
  %96 = vmatpush1.msra.mxu0 0.0
  %97 = vmatprep.subr.mxu0 0.0
  %98 = vmatpush1.msra.mxu0 0.0
  %99 = vmatprep.subr.mxu0 0.0
  %100 = vmatpush1.msra.mxu0 0.0
  %101 = vmatprep.subr.mxu0 0.0
  %102 = vmatpush1.msra.mxu0 0.0
  %103 = vmatprep.subr.mxu0 0.0
  %104 = vmatpush1.msra.mxu0 0.0
  %105 = vmatprep.subr.mxu0 0.0
  %106 = vmatpush1.msra.mxu0 0.0
  %107 = vmatprep.subr.mxu0 0.0
  %108 = vmatpush1.msra.mxu0 0.0
  %109 = vmatprep.mubr.f32.mxu0 0.0
  %110 = vmatmul.mubr.f32.gmra.mrb[0].mxu0 %v39
  %v111 = vpop.f32.mrb[0].mxu0
  %v112 = vadd.f32 0.0, %v111
  %v113 = vpop.f32.mrb[0].mxu0
  %114 = vdwg.mxu0
  %vm115 = vcmask 130048
  %v117 = vsel %vm115, %v32, 0
  %119 = vmatprep.subr.mxu0 0.0
  %120 = vmatpush1.msra.mxu0 %v33
  %121 = vmatprep.subr.mxu0 0.0
  %122 = vmatpush1.msra.mxu0 %v34
  %123 = vmatprep.subr.mxu0 0.0
  %124 = vmatpush1.msra.mxu0 0.0
  %125 = vmatprep.subr.mxu0 0.0
  %126 = vmatpush1.msra.mxu0 0.0
  %127 = vmatprep.subr.mxu0 0.0
  %128 = vmatpush1.msra.mxu0 0.0
  %129 = vmatprep.subr.mxu0 0.0
  %130 = vmatpush1.msra.mxu0 0.0
  %131 = vmatprep.subr.mxu0 0.0
  %132 = vmatpush1.msra.mxu0 0.0
  %133 = vmatprep.subr.mxu0 0.0
  %134 = vmatpush1.msra.mxu0 0.0
  %135 = vmatprep.subr.mxu0 0.0
  %136 = vmatpush1.msra.mxu0 0.0
  %137 = vmatprep.subr.mxu0 0.0
  %138 = vmatpush1.msra.mxu0 0.0
  %139 = vmatprep.subr.mxu0 0.0
  %140 = vmatpush1.msra.mxu0 0.0
  %141 = vmatprep.subr.mxu0 0.0
  %142 = vmatpush1.msra.mxu0 0.0
  %143 = vmatprep.subr.mxu0 0.0
  %144 = vmatpush1.msra.mxu0 0.0
  %145 = vmatprep.subr.mxu0 0.0
  %146 = vmatpush1.msra.mxu0 0.0
  %147 = vmatprep.subr.mxu0 0.0
  %148 = vmatpush1.msra.mxu0 0.0
  %149 = vmatprep.subr.mxu0 0.0
  %150 = vmatpush1.msra.mxu0 0.0
  %151 = vmatprep.subr.mxu0 0.0
  %152 = vmatpush1.msra.mxu0 0.0
  %153 = vmatprep.subr.mxu0 0.0
  %154 = vmatpush1.msra.mxu0 0.0
  %155 = vmatprep.subr.mxu0 0.0
  %156 = vmatpush1.msra.mxu0 0.0
  %157 = vmatprep.subr.mxu0 0.0
  %158 = vmatpush1.msra.mxu0 0.0
  %159 = vmatprep.subr.mxu0 0.0
  %160 = vmatpush1.msra.mxu0 0.0
  %161 = vmatprep.subr.mxu0 0.0
  %162 = vmatpush1.msra.mxu0 0.0
  %163 = vmatprep.subr.mxu0 0.0
  %164 = vmatpush1.msra.mxu0 0.0
  %165 = vmatprep.subr.mxu0 0.0
  %166 = vmatpush1.msra.mxu0 0.0
  %167 = vmatprep.subr.mxu0 0.0
  %168 = vmatpush1.msra.mxu0 0.0
  %169 = vmatprep.subr.mxu0 0.0
  %170 = vmatpush1.msra.mxu0 0.0
  %171 = vmatprep.subr.mxu0 0.0
  %172 = vmatpush1.msra.mxu0 0.0
  %173 = vmatprep.subr.mxu0 0.0
  %174 = vmatpush1.msra.mxu0 0.0
  %175 = vmatprep.subr.mxu0 0.0
  %176 = vmatpush1.msra.mxu0 0.0
  %177 = vmatprep.subr.mxu0 0.0
  %178 = vmatpush1.msra.mxu0 0.0
  %179 = vmatprep.subr.mxu0 0.0
  %180 = vmatpush1.msra.mxu0 0.0
  %181 = vmatprep.subr.mxu0 0.0
  %182 = vmatpush1.msra.mxu0 0.0
  %183 = vmatprep.mubr.f32.mxu0 0.0
  %184 = vmatmul.mubr.f32.gmra.mrb[0].mxu0 %v117
  %v185 = vpop.f32.mrb[0].mxu0
  %v186 = vadd.f32 %v112, %v185
  %v187 = vpop.f32.mrb[0].mxu0
  %188 = vdwg.mxu0
  %v189 = vld [vmem:[%s4] sm:$0x1]
  %v191 = vlaneseq
  %v192 = vshrl.u32 %v191, 7
  %v193 = vsub.s32 0, %v192
  %v194 = vrot.slane %v189, %v193
  %v196 = vadd.f32 %v186, %v194
  %v197 = vmax.f32 %v196, 0.0
  %v198 = vld [vmem:[%s5] sm:$0xff]
  %v199 = vld [vmem:[%s5 + $0x8] sm:$0xff]
  %v200 = vld [vmem:[%s5 + $0x10] sm:$0xff]
  %v201 = vld [vmem:[%s5 + $0x18] sm:$0xff]
  %v202 = vld [vmem:[%s5 + $0x20] sm:$0xff]
  %v203 = vld [vmem:[%s5 + $0x28] sm:$0xff]
  %v204 = vld [vmem:[%s5 + $0x30] sm:$0xff]
  %v205 = vld [vmem:[%s5 + $0x38] sm:$0xff]
  %v206 = vld [vmem:[%s6] sm:$0x1]
  %v208 = vlaneseq
  %v209 = vshrl.u32 %v208, 7
  %v210 = vsub.s32 0, %v209
  %v211 = vrot.slane %v206, %v210
  %vm213 = vcmask 523264
  %v215 = vsel %vm213, %v197, 0
  %217 = vmatprep.subr.mxu0 0.0
  %218 = vmatpush1.msra.mxu0 %v198
  %219 = vmatprep.subr.mxu0 0.0
  %220 = vmatpush1.msra.mxu0 %v199
  %221 = vmatprep.subr.mxu0 0.0
  %222 = vmatpush1.msra.mxu0 %v200
  %223 = vmatprep.subr.mxu0 0.0
  %224 = vmatpush1.msra.mxu0 %v201
  %225 = vmatprep.subr.mxu0 0.0
  %226 = vmatpush1.msra.mxu0 %v202
  %227 = vmatprep.subr.mxu0 0.0
  %228 = vmatpush1.msra.mxu0 %v203
  %229 = vmatprep.subr.mxu0 0.0
  %230 = vmatpush1.msra.mxu0 %v204
  %231 = vmatprep.subr.mxu0 0.0
  %232 = vmatpush1.msra.mxu0 %v205
  %233 = vmatprep.subr.mxu0 0.0
  %234 = vmatpush1.msra.mxu0 0.0
  %235 = vmatprep.subr.mxu0 0.0
  %236 = vmatpush1.msra.mxu0 0.0
  %237 = vmatprep.subr.mxu0 0.0
  %238 = vmatpush1.msra.mxu0 0.0
  %239 = vmatprep.subr.mxu0 0.0
  %240 = vmatpush1.msra.mxu0 0.0
  %241 = vmatprep.subr.mxu0 0.0
  %242 = vmatpush1.msra.mxu0 0.0
  %243 = vmatprep.subr.mxu0 0.0
  %244 = vmatpush1.msra.mxu0 0.0
  %245 = vmatprep.subr.mxu0 0.0
  %246 = vmatpush1.msra.mxu0 0.0
  %247 = vmatprep.subr.mxu0 0.0
  %248 = vmatpush1.msra.mxu0 0.0
  %249 = vmatprep.subr.mxu0 0.0
  %250 = vmatpush1.msra.mxu0 0.0
  %251 = vmatprep.subr.mxu0 0.0
  %252 = vmatpush1.msra.mxu0 0.0
  %253 = vmatprep.subr.mxu0 0.0
  %254 = vmatpush1.msra.mxu0 0.0
  %255 = vmatprep.subr.mxu0 0.0
  %256 = vmatpush1.msra.mxu0 0.0
  %257 = vmatprep.subr.mxu0 0.0
  %258 = vmatpush1.msra.mxu0 0.0
  %259 = vmatprep.subr.mxu0 0.0
  %260 = vmatpush1.msra.mxu0 0.0
  %261 = vmatprep.subr.mxu0 0.0
  %262 = vmatpush1.msra.mxu0 0.0
  %263 = vmatprep.subr.mxu0 0.0
  %264 = vmatpush1.msra.mxu0 0.0
  %265 = vmatprep.subr.mxu0 0.0
  %266 = vmatpush1.msra.mxu0 0.0
  %267 = vmatprep.subr.mxu0 0.0
  %268 = vmatpush1.msra.mxu0 0.0
  %269 = vmatprep.subr.mxu0 0.0
  %270 = vmatpush1.msra.mxu0 0.0
  %271 = vmatprep.subr.mxu0 0.0
  %272 = vmatpush1.msra.mxu0 0.0
  %273 = vmatprep.subr.mxu0 0.0
  %274 = vmatpush1.msra.mxu0 0.0
  %275 = vmatprep.subr.mxu0 0.0
  %276 = vmatpush1.msra.mxu0 0.0
  %277 = vmatprep.subr.mxu0 0.0
  %278 = vmatpush1.msra.mxu0 0.0
  %279 = vmatprep.subr.mxu0 0.0
  %280 = vmatpush1.msra.mxu0 0.0
  %281 = vmatprep.mubr.f32.mxu0 0.0
  %282 = vmatmul.mubr.f32.gmra.mrb[0].mxu0 %v215
  %v283 = vpop.f32.mrb[0].mxu0
  %v284 = vadd.f32 %v211, %v283
  %v285 = vpop.f32.mrb[0].mxu0
  %286 = vdwg.mxu0
  %v287 = vmax.f32 %v284, 0.0
  %v288 = vld [vmem:[%s7] sm:$0xff]
  %v289 = vld [vmem:[%s7 + $0x8] sm:$0xff]
  %v290 = vld [vmem:[%s7 + $0x10] sm:$0xff]
  %v291 = vld [vmem:[%s7 + $0x18] sm:$0xff]
  %v292 = vld [vmem:[%s7 + $0x20] sm:$0xff]
  %v293 = vld [vmem:[%s7 + $0x28] sm:$0xff]
  %v294 = vld [vmem:[%s7 + $0x30] sm:$0xff]
  %v295 = vld [vmem:[%s7 + $0x38] sm:$0xff]
  %v296 = vld [vmem:[%s8] sm:$0x1]
  %v298 = vlaneseq
  %v299 = vshrl.u32 %v298, 7
  %v300 = vsub.s32 0, %v299
  %v301 = vrot.slane %v296, %v300
  %v304 = vsel %vm213, %v287, 0
  %306 = vmatprep.subr.mxu0 0.0
  %307 = vmatpush1.msra.mxu0 %v288
  %308 = vmatprep.subr.mxu0 0.0
  %309 = vmatpush1.msra.mxu0 %v289
  %310 = vmatprep.subr.mxu0 0.0
  %311 = vmatpush1.msra.mxu0 %v290
  %312 = vmatprep.subr.mxu0 0.0
  %313 = vmatpush1.msra.mxu0 %v291
  %314 = vmatprep.subr.mxu0 0.0
  %315 = vmatpush1.msra.mxu0 %v292
  %316 = vmatprep.subr.mxu0 0.0
  %317 = vmatpush1.msra.mxu0 %v293
  %318 = vmatprep.subr.mxu0 0.0
  %319 = vmatpush1.msra.mxu0 %v294
  %320 = vmatprep.subr.mxu0 0.0
  %321 = vmatpush1.msra.mxu0 %v295
  %322 = vmatprep.subr.mxu0 0.0
  %323 = vmatpush1.msra.mxu0 0.0
  %324 = vmatprep.subr.mxu0 0.0
  %325 = vmatpush1.msra.mxu0 0.0
  %326 = vmatprep.subr.mxu0 0.0
  %327 = vmatpush1.msra.mxu0 0.0
  %328 = vmatprep.subr.mxu0 0.0
  %329 = vmatpush1.msra.mxu0 0.0
  %330 = vmatprep.subr.mxu0 0.0
  %331 = vmatpush1.msra.mxu0 0.0
  %332 = vmatprep.subr.mxu0 0.0
  %333 = vmatpush1.msra.mxu0 0.0
  %334 = vmatprep.subr.mxu0 0.0
  %335 = vmatpush1.msra.mxu0 0.0
  %336 = vmatprep.subr.mxu0 0.0
  %337 = vmatpush1.msra.mxu0 0.0
  %338 = vmatprep.subr.mxu0 0.0
  %339 = vmatpush1.msra.mxu0 0.0
  %340 = vmatprep.subr.mxu0 0.0
  %341 = vmatpush1.msra.mxu0 0.0
  %342 = vmatprep.subr.mxu0 0.0
  %343 = vmatpush1.msra.mxu0 0.0
  %344 = vmatprep.subr.mxu0 0.0
  %345 = vmatpush1.msra.mxu0 0.0
  %346 = vmatprep.subr.mxu0 0.0
  %347 = vmatpush1.msra.mxu0 0.0
  %348 = vmatprep.subr.mxu0 0.0
  %349 = vmatpush1.msra.mxu0 0.0
  %350 = vmatprep.subr.mxu0 0.0
  %351 = vmatpush1.msra.mxu0 0.0
  %352 = vmatprep.subr.mxu0 0.0
  %353 = vmatpush1.msra.mxu0 0.0
  %354 = vmatprep.subr.mxu0 0.0
  %355 = vmatpush1.msra.mxu0 0.0
  %356 = vmatprep.subr.mxu0 0.0
  %357 = vmatpush1.msra.mxu0 0.0
  %358 = vmatprep.subr.mxu0 0.0
  %359 = vmatpush1.msra.mxu0 0.0
  %360 = vmatprep.subr.mxu0 0.0
  %361 = vmatpush1.msra.mxu0 0.0
  %362 = vmatprep.subr.mxu0 0.0
  %363 = vmatpush1.msra.mxu0 0.0
  %364 = vmatprep.subr.mxu0 0.0
  %365 = vmatpush1.msra.mxu0 0.0
  %366 = vmatprep.subr.mxu0 0.0
  %367 = vmatpush1.msra.mxu0 0.0
  %368 = vmatprep.subr.mxu0 0.0
  %369 = vmatpush1.msra.mxu0 0.0
  %370 = vmatprep.mubr.f32.mxu0 0.0
  %371 = vmatmul.mubr.f32.gmra.mrb[0].mxu0 %v304
  %v372 = vpop.f32.mrb[0].mxu0
  %v373 = vadd.f32 %v301, %v372
  %v374 = vpop.f32.mrb[0].mxu0
  %375 = vdwg.mxu0
  %vm376 = vcmask 15360
  %377 = vst.msk [vmem:[%s9] sm:$0xff] %vm376, %v373
  // Predicated region
  $region38: #{tpu_custom_call.1} parent=0 // pred_check
    _
  $region39: #{tpu_custom_call.1} parent=0 // pred_check_branch
    %379 = sbr.rel (0) target = $region41
  $region40: #{tpu_custom_call.1} parent=0 // pred_region
    _
  $region41: #{tpu_custom_call.1} parent=0 // pred_fallthru
    _
  // Predicated region
  $region42: #{tpu_custom_call.1} parent=0 // pred_check
    _
  $region43: #{tpu_custom_call.1} parent=0 // pred_check_branch
    %381 = sbr.rel (0) target = $region45
  $region44: #{tpu_custom_call.1} parent=0 // pred_region
    _
  $region45: #{tpu_custom_call.1} parent=0 // pred_fallthru
    _

</llo_original>
